<compile_context>
chip_gen: v7x
topology: tpu7x:2x2x1
jax: 0.10.0
libtpu: 0.0.40
codegen_flags: <defaults>
</compile_context>

<pallas_src>
import jax
import jax.numpy as jnp
from jax.experimental import pallas as pl
from jax.experimental.pallas import tpu as pltpu


def _cubic(A, B, C, D, t):
    # B + 0.5*t*(C - A + t*(2A - 5B + 4C - D + t*(3(B-C) + D - A)))
    return B + 0.5 * t * (
        C - A + t * (2.0 * A - 5.0 * B + 4.0 * C - D + t * (3.0 * (B - C) + D - A))
    )


# ---------------------------------------------------------------------------
# Pallas kernel: x-direction bicubic + mask products + L1 partial sums.
# Grid = (pair, pixel-row tile).  Image-like refs are lane-dense
# (..., rows-of-128, 128) float32.
# ---------------------------------------------------------------------------
def _loss_kernel(c0_ref, c1_ref, c2_ref, c3_ref, tx_ref, prev_ref, wm_ref,
                 pix_ref, out_ref, acc_ref):
    t = pl.program_id(1)

    @pl.when(t == 0)
    def _init():
        acc_ref[...] = jnp.zeros_like(acc_ref)

    tx = tx_ref[...][:, None, :, :]                               # (B, 1, R, 128)
    warped = _cubic(c0_ref[...], c1_ref[...], c2_ref[...], c3_ref[...], tx)
    em = wm_ref[...] * pix_ref[...][None]                         # (B, C, R, 128)
    d = jnp.abs(em * (warped - prev_ref[...][None]))
    acc_ref[...] += jnp.sum(d)

    @pl.when(t == pl.num_programs(1) - 1)
    def _finalize():
        out_ref[0] = acc_ref[...]


# ---------------------------------------------------------------------------
# Glue (plain JAX, fused by XLA): gather + y-direction cubic, occlusion mask,
# lane-dense reshapes.  No broadcasting is materialized here.
# ---------------------------------------------------------------------------
def _warp_columns(x, flo):
    """16-tap gather collapsed along y.  Returns 4 column planes (B,C,H,W),
    per-batch frac-x (B,H,W) and the in-bounds mask (H,W) (indices and mask
    come from batch 0 only, exactly as in the reference)."""
    B, C, H, W = x.shape
    gx = jnp.arange(W, dtype=jnp.float32)[None, :]
    gy = jnp.arange(H, dtype=jnp.float32)[:, None]
    vx = gx[None, :, :] + flo[:, 0]                               # (B, H, W)
    vy = gy[None, :, :] + flo[:, 1]
    x0 = jnp.floor(vx[0] - 1.0).astype(jnp.int32)
    y0 = jnp.floor(vy[0] - 1.0).astype(jnp.int32)
    outside = (-x0 > 0) | (x0 + 3 > W - 1) | (-y0 > 0) | (y0 + 3 > H - 1)
    inb = (~outside).astype(jnp.float32)                          # (H, W)
    xs = [jnp.clip(x0 + j, 0, W - 1) for j in range(4)]
    ys = [jnp.clip(y0 + k, 0, H - 1) for k in range(4)]
    ty = (vy - jnp.floor(vy))[:, None, :, :]                      # (B, 1, H, W)
    tx = vx - jnp.floor(vx)                                       # (B, H, W)
    cols = []
    for j in range(4):
        taps = [x[:, :, ys[k], xs[j]] for k in range(4)]          # 4 x (B,C,H,W)
        cols.append(_cubic(taps[0], taps[1], taps[2], taps[3], ty))
    return cols, tx, inb


def _occlusion_pixmask(flo, inb):
    """(1 - dilated(|d/dy fx + d/dx fy| > 0.75) with forced border) * inb.
    Shift-based diffs + separable 4-tap max replace the band-matrix matmuls.
    scipy.ndimage.binary_dilation with np.ones((4,4)) (default origin):
      out[i, j] = OR over m[i+di, j+dj], (di, dj) in {-1, 0, +1, +2}^2."""
    fx = flo[0, 0]
    fy = flo[0, 1]
    H, W = fx.shape
    a = jnp.zeros((H, W), jnp.float32).at[: H - 1, :].set(fx[1:, :] - fx[:-1, :])
    b = jnp.zeros((H, W), jnp.float32).at[:, : W - 1].set(fy[:, 1:] - fy[:, :-1])
    m = (jnp.abs(a + b) > 0.75).astype(jnp.float32)
    mp = jnp.pad(m, ((1, 2), (1, 2)))
    rmax = jnp.maximum(jnp.maximum(mp[0:H, :], mp[1:H + 1, :]),
                       jnp.maximum(mp[2:H + 2, :], mp[3:H + 3, :]))   # (H, W+3)
    dil = jnp.maximum(jnp.maximum(rmax[:, 0:W], rmax[:, 1:W + 1]),
                      jnp.maximum(rmax[:, 2:W + 2], rmax[:, 3:W + 3]))  # (H, W)
    ri = jnp.arange(H)[:, None]
    ci = jnp.arange(W)[None, :]
    border = (ri <= 1) | (ri >= H - 2) | (ci <= 1) | (ci >= W - 2)
    dil = jnp.where(border, 1.0, dil)
    return inb * (1.0 - dil)                                      # (H, W)


def _lane_dense(a, hw, hwp, hwr):
    """(..., H, W) -> (..., hwr, 128), zero padded along the pixel axis."""
    a = a.reshape(a.shape[:-2] + (hw,))
    if hwp != hw:
        a = jnp.pad(a, [(0, 0)] * (a.ndim - 1) + [(0, hwp - hw)])
    return a.reshape(a.shape[:-1] + (hwr, 128))


def _pair_arrays(x, flo, prev, mask0, excl, hwp, hwr):
    B, C, H, W = x.shape
    x = x.astype(jnp.float32)
    flo = flo.astype(jnp.float32)
    cols, tx, inb = _warp_columns(x, flo)
    pix = _occlusion_pixmask(flo, inb)
    hw = H * W
    ld = lambda a: _lane_dense(a, hw, hwp, hwr)
    c4 = [ld(c) for c in cols]                                    # (B, C, hwr, 128)
    tx4 = ld(tx)                                                  # (B, hwr, 128)
    prev4 = ld(prev.astype(jnp.float32))                          # (C, hwr, 128)
    wm4 = ld(mask0.astype(jnp.float32) * excl.astype(jnp.float32))
    pix4 = ld(pix)[None]                                          # (1, hwr, 128)
    return c4, tx4, prev4, wm4, pix4


def _tiling(hw):
    hwr = (hw + 127) // 128
    if hwr <= 32:
        r_tile = hwr                      # full pixel-row extent (tiny frames)
    else:
        hwr = ((hwr + 7) // 8) * 8        # keep the sublane tile a multiple of 8
        r_tile = max(r for r in (32, 24, 16, 8) if hwr % r == 0)
    return hwr * 128, hwr, r_tile


@jax.jit
def _loss_jit(input1, prev_frame1, flow1, mask1_0, excl1,
              input2, prev_frame2, flow2, mask2_0, excl2):
    B, C, H, W = input1.shape
    hw = H * W
    hwp, hwr, r_tile = _tiling(hw)
    n_tiles = hwr // r_tile

    a1 = _pair_arrays(input1, flow1, prev_frame1, mask1_0, excl1, hwp, hwr)
    a2 = _pair_arrays(input2, flow2, prev_frame2, mask2_0, excl2, hwp, hwr)
    cat = lambda u, v: jnp.concatenate((u, v), axis=0)
    c0, c1, c2, c3 = [cat(a1[0][k], a2[0][k]) for k in range(4)]  # (2B, C, hwr, 128)
    tx = cat(a1[1], a2[1])                                        # (2B, hwr, 128)
    prv = cat(a1[2], a2[2])                                       # (2C, hwr, 128)
    wm = cat(a1[3], a2[3])                                        # (2B, C, hwr, 128)
    pix = cat(a1[4], a2[4])                                       # (2, hwr, 128)

    spec_bc = pl.BlockSpec((B, C, r_tile, 128), lambda p, t: (p, 0, t, 0))
    spec_b = pl.BlockSpec((B, r_tile, 128), lambda p, t: (p, t, 0))
    spec_c = pl.BlockSpec((C, r_tile, 128), lambda p, t: (p, t, 0))
    spec_px = pl.BlockSpec((1, r_tile, 128), lambda p, t: (p, t, 0))

    sums = pl.pallas_call(
        _loss_kernel,
        out_shape=jax.ShapeDtypeStruct((2, 1, 128), jnp.float32),
        grid_spec=pltpu.PrefetchScalarGridSpec(
            num_scalar_prefetch=0,
            grid=(2, n_tiles),
            in_specs=[spec_bc, spec_bc, spec_bc, spec_bc,
                      spec_b, spec_c, spec_bc, spec_px],
            out_specs=pl.BlockSpec((1, 1, 128), lambda p, t: (p, 0, 0)),
            scratch_shapes=[pltpu.VMEM((1, 128), jnp.float32)],
        ),
        compiler_params=pltpu.CompilerParams(
            dimension_semantics=("parallel", "arbitrary"),
            vmem_limit_bytes=32 * 1024 * 1024),
    )(c0, c1, c2, c3, tx, prv, wm, pix)

    # per-pair mean L1, summed (both pairs have B*C*H*W elements)
    return (sums[0, 0, 0] + sums[1, 0, 0]) / jnp.float32(B * C * H * W)


def loss_forward(input1, prev_frame1, flow1, mask1_0, exclusive_mask1,
                 input2, prev_frame2, flow2, mask2_0, exclusive_mask2, i):
    del i  # unused in the reference forward as well
    return _loss_jit(input1, prev_frame1, flow1, mask1_0, exclusive_mask1,
                     input2, prev_frame2, flow2, mask2_0, exclusive_mask2)


if __name__ == "__main__":
    key = jax.random.PRNGKey(0)
    # C=3 is required by cubic_interpolation's hard-coded .repeat(1, 3, 1, 1)
    B, C, H, W = 2, 3, 16, 16
    ks = jax.random.split(key, 8)
    input1 = jax.random.uniform(ks[0], (B, C, H, W), jnp.float32)
    input2 = jax.random.uniform(ks[1], (B, C, H, W), jnp.float32)
    prev_frame1 = jax.random.uniform(ks[2], (C, H, W), jnp.float32)
    prev_frame2 = jax.random.uniform(ks[3], (C, H, W), jnp.float32)
    flow1 = 3.0 * jax.random.normal(ks[4], (B, 2, H, W), jnp.float32)
    flow2 = 3.0 * jax.random.normal(ks[5], (B, 2, H, W), jnp.float32)
    mask1_0 = jnp.ones((B, C, H, W), jnp.float32)
    mask2_0 = jnp.ones((B, C, H, W), jnp.float32)
    exclusive_mask1 = (jax.random.uniform(ks[6], (B, C, H, W)) > 0.3).astype(jnp.float32)
    exclusive_mask2 = (jax.random.uniform(ks[7], (B, C, H, W)) > 0.3).astype(jnp.float32)

    loss = loss_forward(input1, prev_frame1, flow1, mask1_0, exclusive_mask1,
                        input2, prev_frame2, flow2, mask2_0, exclusive_mask2, 0)
    jax.block_until_ready(loss)
    assert bool(jnp.isfinite(loss))
    print("KERNEL_OK")
</pallas_src>

<mosaic_0001>
module attributes {stable_mosaic.version = 11 : i64} {
  func.func @_loss_kernel(%arg0: i32, %arg1: i32, %arg2: memref<2x3x2x128xf32, #tpu.memory_space<vmem>>, %arg3: memref<2x3x2x128xf32, #tpu.memory_space<vmem>>, %arg4: memref<2x3x2x128xf32, #tpu.memory_space<vmem>>, %arg5: memref<2x3x2x128xf32, #tpu.memory_space<vmem>>, %arg6: memref<2x2x128xf32, #tpu.memory_space<vmem>>, %arg7: memref<3x2x128xf32, #tpu.memory_space<vmem>>, %arg8: memref<2x3x2x128xf32, #tpu.memory_space<vmem>>, %arg9: memref<1x2x128xf32, #tpu.memory_space<vmem>>, %arg10: memref<1x1x128xf32, #tpu.memory_space<vmem>>, %arg11: memref<1x128xf32, #tpu.memory_space<vmem>>) attributes {dimension_semantics = [#tpu.dimension_semantics<parallel>, #tpu.dimension_semantics<arbitrary>], iteration_bounds = array<i64: 2, 1>, scalar_prefetch = 0 : i64, scratch_operands = 1 : i64, tpu.core_type = #tpu.core_type<tc>, window_params = [{transform_indices = @transform_0, window_bounds = array<i64: 2, 3, 2, 128>}, {transform_indices = @transform_1, window_bounds = array<i64: 2, 3, 2, 128>}, {transform_indices = @transform_2, window_bounds = array<i64: 2, 3, 2, 128>}, {transform_indices = @transform_3, window_bounds = array<i64: 2, 3, 2, 128>}, {transform_indices = @transform_4, window_bounds = array<i64: 2, 2, 128>}, {transform_indices = @transform_5, window_bounds = array<i64: 3, 2, 128>}, {transform_indices = @transform_6, window_bounds = array<i64: 2, 3, 2, 128>}, {transform_indices = @transform_7, window_bounds = array<i64: 1, 2, 128>}, {transform_indices = @transform_8, window_bounds = array<i64: 1, 1, 128>}]} {
    %c0_i32 = arith.constant 0 : i32
    %0 = arith.cmpi eq, %arg1, %c0_i32 : i32
    %1 = arith.extui %0 : i1 to i32
    %c0_i32_0 = arith.constant 0 : i32
    %2 = arith.cmpi ne, %1, %c0_i32_0 : i32
    scf.if %2 {
      %cst_40 = arith.constant 0.000000e+00 : f32
      %57 = vector.broadcast %cst_40 : f32 to vector<1x128xf32>
      %c0_41 = arith.constant 0 : index
      %c0_42 = arith.constant 0 : index
      %58 = vector.load %arg11[%c0_41, %c0_42] : memref<1x128xf32, #tpu.memory_space<vmem>>, vector<1x128xf32>
      tpu.vector_store %arg11[%c0_41, %c0_42], %57 {strides = array<i32>} : memref<1x128xf32, #tpu.memory_space<vmem>>, vector<1x128xf32>,
    } else {
    }
    %c0 = arith.constant 0 : index
    %c0_1 = arith.constant 0 : index
    %c0_2 = arith.constant 0 : index
    %3 = vector.load %arg6[%c0, %c0_1, %c0_2] : memref<2x2x128xf32, #tpu.memory_space<vmem>>, vector<2x2x128xf32>
    %4 = vector.shape_cast %3 : vector<2x2x128xf32> to vector<2x1x2x128xf32>
    %c0_3 = arith.constant 0 : index
    %c0_4 = arith.constant 0 : index
    %c0_5 = arith.constant 0 : index
    %c0_6 = arith.constant 0 : index
    %5 = vector.load %arg2[%c0_3, %c0_4, %c0_5, %c0_6] : memref<2x3x2x128xf32, #tpu.memory_space<vmem>>, vector<2x3x2x128xf32>
    %c0_7 = arith.constant 0 : index
    %c0_8 = arith.constant 0 : index
    %c0_9 = arith.constant 0 : index
    %c0_10 = arith.constant 0 : index
    %6 = vector.load %arg3[%c0_7, %c0_8, %c0_9, %c0_10] : memref<2x3x2x128xf32, #tpu.memory_space<vmem>>, vector<2x3x2x128xf32>
    %c0_11 = arith.constant 0 : index
    %c0_12 = arith.constant 0 : index
    %c0_13 = arith.constant 0 : index
    %c0_14 = arith.constant 0 : index
    %7 = vector.load %arg4[%c0_11, %c0_12, %c0_13, %c0_14] : memref<2x3x2x128xf32, #tpu.memory_space<vmem>>, vector<2x3x2x128xf32>
    %c0_15 = arith.constant 0 : index
    %c0_16 = arith.constant 0 : index
    %c0_17 = arith.constant 0 : index
    %c0_18 = arith.constant 0 : index
    %8 = vector.load %arg5[%c0_15, %c0_16, %c0_17, %c0_18] : memref<2x3x2x128xf32, #tpu.memory_space<vmem>>, vector<2x3x2x128xf32>
    %cst = arith.constant 5.000000e-01 : f32
    %9 = vector.broadcast %cst : f32 to vector<2x1x2x128xf32>
    %10 = arith.mulf %9, %4 : vector<2x1x2x128xf32>
    %11 = arith.subf %7, %5 : vector<2x3x2x128xf32>
    %cst_19 = arith.constant 2.000000e+00 : f32
    %12 = vector.broadcast %cst_19 : f32 to vector<2x3x2x128xf32>
    %13 = arith.mulf %12, %5 : vector<2x3x2x128xf32>
    %cst_20 = arith.constant 5.000000e+00 : f32
    %14 = vector.broadcast %cst_20 : f32 to vector<2x3x2x128xf32>
    %15 = arith.mulf %14, %6 : vector<2x3x2x128xf32>
    %16 = arith.subf %13, %15 : vector<2x3x2x128xf32>
    %cst_21 = arith.constant 4.000000e+00 : f32
    %17 = vector.broadcast %cst_21 : f32 to vector<2x3x2x128xf32>
    %18 = arith.mulf %17, %7 : vector<2x3x2x128xf32>
    %19 = arith.addf %16, %18 : vector<2x3x2x128xf32>
    %20 = arith.subf %19, %8 : vector<2x3x2x128xf32>
    %21 = arith.subf %6, %7 : vector<2x3x2x128xf32>
    %cst_22 = arith.constant 3.000000e+00 : f32
    %22 = vector.broadcast %cst_22 : f32 to vector<2x3x2x128xf32>
    %23 = arith.mulf %22, %21 : vector<2x3x2x128xf32>
    %24 = arith.addf %23, %8 : vector<2x3x2x128xf32>
    %25 = arith.subf %24, %5 : vector<2x3x2x128xf32>
    %26 = vector.broadcast %4 : vector<2x1x2x128xf32> to vector<2x3x2x128xf32>
    %27 = arith.mulf %26, %25 : vector<2x3x2x128xf32>
    %28 = arith.addf %20, %27 : vector<2x3x2x128xf32>
    %29 = vector.broadcast %4 : vector<2x1x2x128xf32> to vector<2x3x2x128xf32>
    %30 = arith.mulf %29, %28 : vector<2x3x2x128xf32>
    %31 = arith.addf %11, %30 : vector<2x3x2x128xf32>
    %32 = vector.broadcast %10 : vector<2x1x2x128xf32> to vector<2x3x2x128xf32>
    %33 = arith.mulf %32, %31 : vector<2x3x2x128xf32>
    %34 = arith.addf %6, %33 : vector<2x3x2x128xf32>
    %c0_23 = arith.constant 0 : index
    %c0_24 = arith.constant 0 : index
    %c0_25 = arith.constant 0 : index
    %c0_26 = arith.constant 0 : index
    %35 = vector.load %arg8[%c0_23, %c0_24, %c0_25, %c0_26] : memref<2x3x2x128xf32, #tpu.memory_space<vmem>>, vector<2x3x2x128xf32>
    %c0_27 = arith.constant 0 : index
    %c0_28 = arith.constant 0 : index
    %c0_29 = arith.constant 0 : index
    %36 = vector.load %arg9[%c0_27, %c0_28, %c0_29] : memref<1x2x128xf32, #tpu.memory_space<vmem>>, vector<1x2x128xf32>
    %37 = vector.shape_cast %36 : vector<1x2x128xf32> to vector<1x1x2x128xf32>
    %38 = vector.broadcast %37 : vector<1x1x2x128xf32> to vector<2x3x2x128xf32>
    %39 = arith.mulf %35, %38 : vector<2x3x2x128xf32>
    %c0_30 = arith.constant 0 : index
    %c0_31 = arith.constant 0 : index
    %c0_32 = arith.constant 0 : index
    %40 = vector.load %arg7[%c0_30, %c0_31, %c0_32] : memref<3x2x128xf32, #tpu.memory_space<vmem>>, vector<3x2x128xf32>
    %41 = vector.shape_cast %40 : vector<3x2x128xf32> to vector<1x3x2x128xf32>
    %42 = vector.broadcast %41 : vector<1x3x2x128xf32> to vector<2x3x2x128xf32>
    %43 = arith.subf %34, %42 : vector<2x3x2x128xf32>
    %44 = arith.mulf %39, %43 : vector<2x3x2x128xf32>
    %45 = math.absf %44 : vector<2x3x2x128xf32>
    %c0_33 = arith.constant 0 : index
    %c0_34 = arith.constant 0 : index
    %46 = vector.load %arg11[%c0_33, %c0_34] : memref<1x128xf32, #tpu.memory_space<vmem>>, vector<1x128xf32>
    %47 = vector.shape_cast %45 : vector<2x3x2x128xf32> to vector<1x2x3x2x128xf32>
    %cst_35 = arith.constant dense<0.000000e+00> : vector<1xf32>
    %48 = vector.multi_reduction <add>, %47, %cst_35 [1, 2, 3, 4] : vector<1x2x3x2x128xf32> to vector<1xf32>
    %49 = vector.shape_cast %48 : vector<1xf32> to vector<1x1x1x1x1xf32>
    %50 = vector.extract %49[0, 0, 0, 0, 0] : f32 from vector<1x1x1x1x1xf32>
    %51 = vector.broadcast %50 : f32 to vector<1x128xf32>
    %52 = arith.addf %46, %51 : vector<1x128xf32>
    %c0_36 = arith.constant 0 : index
    %c0_37 = arith.constant 0 : index
    %53 = vector.load %arg11[%c0_36, %c0_37] : memref<1x128xf32, #tpu.memory_space<vmem>>, vector<1x128xf32>
    tpu.vector_store %arg11[%c0_36, %c0_37], %52 {strides = array<i32>} : memref<1x128xf32, #tpu.memory_space<vmem>>, vector<1x128xf32>,
    %c0_i32_38 = arith.constant 0 : i32
    %54 = arith.cmpi eq, %arg1, %c0_i32_38 : i32
    %55 = arith.extui %54 : i1 to i32
    %c0_i32_39 = arith.constant 0 : i32
    %56 = arith.cmpi ne, %55, %c0_i32_39 : i32
    scf.if %56 {
      %c0_40 = arith.constant 0 : index
      %c0_41 = arith.constant 0 : index
      %57 = vector.load %arg11[%c0_40, %c0_41] : memref<1x128xf32, #tpu.memory_space<vmem>>, vector<1x128xf32>
      %c0_42 = arith.constant 0 : index
      %c0_43 = arith.constant 0 : index
      %c0_44 = arith.constant 0 : index
      %58 = vector.load %arg10[%c0_42, %c0_43, %c0_44] : memref<1x1x128xf32, #tpu.memory_space<vmem>>, vector<1x1x128xf32>
      %59 = vector.shape_cast %58 : vector<1x1x128xf32> to vector<1x128xf32>
      %60 = vector.shape_cast %57 : vector<1x128xf32> to vector<1x1x128xf32>
      tpu.vector_store %arg10[%c0_42, %c0_43, %c0_44], %60 {strides = array<i32>} : memref<1x1x128xf32, #tpu.memory_space<vmem>>, vector<1x1x128xf32>,
    } else {
    }
    return
  }
  func.func @transform_0(%arg0: i32, %arg1: i32) -> (i32, i32, i32, i32) {
    %c0_i32 = arith.constant 0 : i32
    %c0_i32_0 = arith.constant 0 : i32
    %c0_i32_1 = arith.constant 0 : i32
    return %arg0, %c0_i32, %arg1, %c0_i32_0 : i32, i32, i32, i32
  }
  func.func @transform_1(%arg0: i32, %arg1: i32) -> (i32, i32, i32, i32) {
    %c0_i32 = arith.constant 0 : i32
    %c0_i32_0 = arith.constant 0 : i32
    %c0_i32_1 = arith.constant 0 : i32
    return %arg0, %c0_i32, %arg1, %c0_i32_0 : i32, i32, i32, i32
  }
  func.func @transform_2(%arg0: i32, %arg1: i32) -> (i32, i32, i32, i32) {
    %c0_i32 = arith.constant 0 : i32
    %c0_i32_0 = arith.constant 0 : i32
    %c0_i32_1 = arith.constant 0 : i32
    return %arg0, %c0_i32, %arg1, %c0_i32_0 : i32, i32, i32, i32
  }
  func.func @transform_3(%arg0: i32, %arg1: i32) -> (i32, i32, i32, i32) {
    %c0_i32 = arith.constant 0 : i32
    %c0_i32_0 = arith.constant 0 : i32
    %c0_i32_1 = arith.constant 0 : i32
    return %arg0, %c0_i32, %arg1, %c0_i32_0 : i32, i32, i32, i32
  }
  func.func @transform_4(%arg0: i32, %arg1: i32) -> (i32, i32, i32) {
    %c0_i32 = arith.constant 0 : i32
    %c0_i32_0 = arith.constant 0 : i32
    return %arg0, %arg1, %c0_i32 : i32, i32, i32
  }
  func.func @transform_5(%arg0: i32, %arg1: i32) -> (i32, i32, i32) {
    %c0_i32 = arith.constant 0 : i32
    %c0_i32_0 = arith.constant 0 : i32
    return %arg0, %arg1, %c0_i32 : i32, i32, i32
  }
  func.func @transform_6(%arg0: i32, %arg1: i32) -> (i32, i32, i32, i32) {
    %c0_i32 = arith.constant 0 : i32
    %c0_i32_0 = arith.constant 0 : i32
    %c0_i32_1 = arith.constant 0 : i32
    return %arg0, %c0_i32, %arg1, %c0_i32_0 : i32, i32, i32, i32
  }
  func.func @transform_7(%arg0: i32, %arg1: i32) -> (i32, i32, i32) {
    %c0_i32 = arith.constant 0 : i32
    %c0_i32_0 = arith.constant 0 : i32
    return %arg0, %arg1, %c0_i32 : i32, i32, i32
  }
  func.func @transform_8(%arg0: i32, %arg1: i32) -> (i32, i32, i32) {
    %c0_i32 = arith.constant 0 : i32
    %c0_i32_0 = arith.constant 0 : i32
    %c0_i32_1 = arith.constant 0 : i32
    return %arg0, %c0_i32, %c0_i32_0 : i32, i32, i32
  }
}

</mosaic_0001>

<llo_original>
// kernel: mul.209
$region0: #{mul.209}
  #allocation0 [shape = 's32[1]{0}', space=sflag, size = 0x4, scoped, tag = 'scoped memory for mul.209']
  %s0 = inlined_call_operand.vmem [shape: f32[2,3,16,16], index: 0, kind: input, shape index: {}]
  %s1 = inlined_call_operand.vmem [shape: f32[2,3,16,16], index: 1, kind: input, shape index: {}]
  %s2 = inlined_call_operand.vmem [shape: f32[2,3,16,16], index: 2, kind: output, shape index: {}]
  %v3 = vld [vmem:[%s0] sm:$0xff]
  %v4 = vld [vmem:[%s1] sm:$0xff]
  %5 = xla_tuple %v3, %v4
  %6 = xla_tuple %5
  %v7 = vmul.f32 %v3, %v4
  %8 = xla_tuple %v7
  %9 = vst [vmem:[%s2] sm:$0xff] %v7
  %s10 = scalar_lea.vmem %s0, 48
  %v11 = vld [vmem:[%s10] sm:$0xff]
  %s12 = scalar_lea.vmem %s1, 48
  %v13 = vld [vmem:[%s12] sm:$0xff]
  %14 = xla_tuple %v11, %v13
  %15 = xla_tuple %14
  %v16 = vmul.f32 %v11, %v13
  %17 = xla_tuple %v16
  %s18 = scalar_lea.vmem %s2, 48
  %19 = vst [vmem:[%s18] sm:$0xff] %v16
  %s20 = scalar_lea.vmem %s0, 16
  %v21 = vld [vmem:[%s20] sm:$0xff]
  %s22 = scalar_lea.vmem %s1, 16
  %v23 = vld [vmem:[%s22] sm:$0xff]
  %24 = xla_tuple %v21, %v23
  %25 = xla_tuple %24
  %v26 = vmul.f32 %v21, %v23
  %27 = xla_tuple %v26
  %s28 = scalar_lea.vmem %s2, 16
  %29 = vst [vmem:[%s28] sm:$0xff] %v26
  %s30 = scalar_lea.vmem %s0, 64
  %v31 = vld [vmem:[%s30] sm:$0xff]
  %s32 = scalar_lea.vmem %s1, 64
  %v33 = vld [vmem:[%s32] sm:$0xff]
  %34 = xla_tuple %v31, %v33
  %35 = xla_tuple %34
  %v36 = vmul.f32 %v31, %v33
  %37 = xla_tuple %v36
  %s38 = scalar_lea.vmem %s2, 64
  %39 = vst [vmem:[%s38] sm:$0xff] %v36
  %s40 = scalar_lea.vmem %s0, 32
  %v41 = vld [vmem:[%s40] sm:$0xff]
  %s42 = scalar_lea.vmem %s1, 32
  %v43 = vld [vmem:[%s42] sm:$0xff]
  %44 = xla_tuple %v41, %v43
  %45 = xla_tuple %44
  %v46 = vmul.f32 %v41, %v43
  %47 = xla_tuple %v46
  %s48 = scalar_lea.vmem %s2, 32
  %49 = vst [vmem:[%s48] sm:$0xff] %v46
  %s50 = scalar_lea.vmem %s0, 80
  %v51 = vld [vmem:[%s50] sm:$0xff]
  %s52 = scalar_lea.vmem %s1, 80
  %v53 = vld [vmem:[%s52] sm:$0xff]
  %54 = xla_tuple %v51, %v53
  %55 = xla_tuple %54
  %v56 = vmul.f32 %v51, %v53
  %57 = xla_tuple %v56
  %s58 = scalar_lea.vmem %s2, 80
  %59 = vst [vmem:[%s58] sm:$0xff] %v56
  %s60 = scalar_lea.vmem %s0, 8
  %v61 = vld [vmem:[%s60] sm:$0xff]
  %s62 = scalar_lea.vmem %s1, 8
  %v63 = vld [vmem:[%s62] sm:$0xff]
  %64 = xla_tuple %v61, %v63
  %65 = xla_tuple %64
  %v66 = vmul.f32 %v61, %v63
  %67 = xla_tuple %v66
  %s68 = scalar_lea.vmem %s2, 8
  %69 = vst [vmem:[%s68] sm:$0xff] %v66
  %s70 = scalar_lea.vmem %s0, 56
  %v71 = vld [vmem:[%s70] sm:$0xff]
  %s72 = scalar_lea.vmem %s1, 56
  %v73 = vld [vmem:[%s72] sm:$0xff]
  %74 = xla_tuple %v71, %v73
  %75 = xla_tuple %74
  %v76 = vmul.f32 %v71, %v73
  %77 = xla_tuple %v76
  %s78 = scalar_lea.vmem %s2, 56
  %79 = vst [vmem:[%s78] sm:$0xff] %v76
  %s80 = scalar_lea.vmem %s0, 24
  %v81 = vld [vmem:[%s80] sm:$0xff]
  %s82 = scalar_lea.vmem %s1, 24
  %v83 = vld [vmem:[%s82] sm:$0xff]
  %84 = xla_tuple %v81, %v83
  %85 = xla_tuple %84
  %v86 = vmul.f32 %v81, %v83
  %87 = xla_tuple %v86
  %s88 = scalar_lea.vmem %s2, 24
  %89 = vst [vmem:[%s88] sm:$0xff] %v86
  %s90 = scalar_lea.vmem %s0, 72
  %v91 = vld [vmem:[%s90] sm:$0xff]
  %s92 = scalar_lea.vmem %s1, 72
  %v93 = vld [vmem:[%s92] sm:$0xff]
  %94 = xla_tuple %v91, %v93
  %95 = xla_tuple %94
  %v96 = vmul.f32 %v91, %v93
  %97 = xla_tuple %v96
  %s98 = scalar_lea.vmem %s2, 72
  %99 = vst [vmem:[%s98] sm:$0xff] %v96
  %s100 = scalar_lea.vmem %s0, 40
  %v101 = vld [vmem:[%s100] sm:$0xff]
  %s102 = scalar_lea.vmem %s1, 40
  %v103 = vld [vmem:[%s102] sm:$0xff]
  %104 = xla_tuple %v101, %v103
  %105 = xla_tuple %104
  %v106 = vmul.f32 %v101, %v103
  %107 = xla_tuple %v106
  %s108 = scalar_lea.vmem %s2, 40
  %109 = vst [vmem:[%s108] sm:$0xff] %v106
  %s110 = scalar_lea.vmem %s0, 88
  %v111 = vld [vmem:[%s110] sm:$0xff]
  %s112 = scalar_lea.vmem %s1, 88
  %v113 = vld [vmem:[%s112] sm:$0xff]
  %114 = xla_tuple %v111, %v113
  %115 = xla_tuple %114
  %v116 = vmul.f32 %v111, %v113
  %117 = xla_tuple %v116
  %s118 = scalar_lea.vmem %s2, 88
  %119 = vst [vmem:[%s118] sm:$0xff] %v116

// kernel: _loss_jit.1
$region0: #{_loss_jit.1}
  #allocation0 [shape = 'u32[]', space=smem, size = 0x4, offset = 0x4, fixed_abs, tag = 'smem constant byte address 0x4 - core index']
  #allocation1 [shape = 'u32[144,128]{1,0:T(1,128)}', space=vmem, size = 0x12000, scoped, tag = 'internal scratch']
  #allocation2 [shape = 'f32[1,128]{1,0:T(1,128)}', space=vmem, size = 0x200, scoped, tag = 'scratch operand']
  %s0 = inlined_call_operand.vmem [shape: f32[4,3,2,128], index: 0, kind: input, shape index: {}]
  %s1 = inlined_call_operand.vmem [shape: f32[4,3,2,128], index: 1, kind: input, shape index: {}]
  %s2 = inlined_call_operand.vmem [shape: f32[4,3,2,128], index: 2, kind: input, shape index: {}]
  %s3 = inlined_call_operand.vmem [shape: f32[4,3,2,128], index: 3, kind: input, shape index: {}]
  %s4 = inlined_call_operand.vmem [shape: f32[4,2,128], index: 4, kind: input, shape index: {}]
  %s5 = inlined_call_operand.vmem [shape: f32[6,2,128], index: 5, kind: input, shape index: {}]
  %s6 = inlined_call_operand.vmem [shape: f32[4,3,2,128], index: 6, kind: input, shape index: {}]
  %s7 = inlined_call_operand.vmem [shape: f32[2,2,128], index: 7, kind: input, shape index: {}]
  %s8 = inlined_call_operand.vmem [shape: f32[2,1,128], index: 8, kind: output, shape index: {}]
  %s9 = sld [smem:[#allocation0]]
  $region73: #{_loss_jit.1} parent=0
    _
  %s11 = ssub.s32 1, %s9
  %s12 = scalar_select 0, %s11, %s9
  loop: start=0, step=1, limit=4
  $region2: #{_loss_jit.1} parent=0 // loop_pre_header
    _
  $region3: #{_loss_jit.1} parent=0 // loop_header
    %s14 = sphi 0, %s18
    %p15 = scmp.ge.s32.totalorder %s14, 4
    %s21 = sphi 0, %s33
    %s22 = sphi 0, %s29
    %s23 = sphi 0, %s21
    %s24 = sphi 0, %s22
    %s25 = sphi 0, %s23
    %s26 = sphi 0, %s24
    %s38 = sphi 0, %s40
    %s41 = sphi 0, %s38
    %s42 = sphi 0, %s41
    %s58 = sphi 0, %s42
    %s66 = sphi 0, %s68
    %s69 = sphi 0, %s66
    %s70 = sphi 0, %s69
    %s86 = sphi 0, %s70
    %s94 = sphi 0, %s96
    %s97 = sphi 0, %s94
    %s98 = sphi 0, %s97
    %s114 = sphi 0, %s98
    %s122 = sphi 0, %s124
    %s125 = sphi 0, %s122
    %s126 = sphi 0, %s125
    %s142 = sphi 0, %s126
    %s150 = sphi 0, %s152
    %s153 = sphi 0, %s150
    %s154 = sphi 0, %s153
    %s170 = sphi 0, %s154
    %s178 = sphi 0, %s180
    %s181 = sphi 0, %s178
    %s182 = sphi 0, %s181
    %s198 = sphi 0, %s182
    %s206 = sphi 0, %s208
    %s209 = sphi 0, %s206
    %s210 = sphi 0, %s209
    %s226 = sphi 0, %s210
    %s234 = sphi 0, %s236
    %s237 = sphi 0, %s234
    %s238 = sphi 0, %s237
    %s254 = sphi 0, %s238
    %s260 = sphi 0, %s262
    %s263 = sphi 0, %s260
    %s264 = sphi 0, %s263
    %s280 = sphi 0, %s264
  $region4: #{_loss_jit.1} parent=0 // loop_header_branch
    %17 = sbr.rel (%p15) target = $region8
  $region5: #{_loss_jit.1} parent=0 // loop_body
    %s19 = ssub.s32 %s14, 1
    %s20 = ssub.s32 %s14, 2
    %s27 = sadd.s32 1, %s22
    %p28 = scmp.ge.s32.totalorder %s27, 1
    %s29 = scalar_select %p28, 0, %s27
    %s30 = sadd.s32 1, %s21
    %s31 = scalar_select %p28, %s30, %s21
    %p32 = scmp.ge.s32.totalorder %s31, 2
    %s33 = scalar_select %p32, 0, %s31
    %s34 = ssub.s32 %s21, %s33
    %s35 = ssub.s32 %s22, %s29
    %s36 = sor.u32 %s34, %s35
    %p37 = scmp.eq.s32.totalorder %s36, 0
    %s39 = sadd.s32 %s38, 1
    %s40 = scalar_select %p37, %s38, %s39
    %p43 = pneg %p37
    %p44 = scmp.eq.s32.totalorder %s14, 1
    %p45 = por %p43, %p44
    %p46 = scmp.ne.s32.totalorder %s38, %s41
    %p47 = scmp.eq.s32.totalorder %s14, 0
    %p48 = por %p46, %p47
    %p49 = scmp.ne.s32.totalorder %s38, %s41
    %p50 = scmp.eq.s32.totalorder %s19, 1
    %p51 = por %p49, %p50
    %p52 = scmp.ne.s32.totalorder %s41, %s42
    %p53 = scmp.eq.s32.totalorder %s19, 0
    %p54 = por %p52, %p53
    %p55 = scmp.ne.s32.totalorder %s41, %s42
    %p56 = scmp.eq.s32.totalorder %s20, 1
    %p57 = por %p55, %p56
    %p59 = scmp.ne.s32.totalorder %s42, %s58
    %p60 = scmp.eq.s32.totalorder %s20, 0
    %p61 = por %p59, %p60
    %s62 = ssub.s32 %s21, %s33
    %s63 = ssub.s32 %s22, %s29
    %s64 = sor.u32 %s62, %s63
    %p65 = scmp.eq.s32.totalorder %s64, 0
    %s67 = sadd.s32 %s66, 1
    %s68 = scalar_select %p65, %s66, %s67
    %p71 = pneg %p65
    %p72 = scmp.eq.s32.totalorder %s14, 1
    %p73 = por %p71, %p72
    %p74 = scmp.ne.s32.totalorder %s66, %s69
    %p75 = scmp.eq.s32.totalorder %s14, 0
    %p76 = por %p74, %p75
    %p77 = scmp.ne.s32.totalorder %s66, %s69
    %p78 = scmp.eq.s32.totalorder %s19, 1
    %p79 = por %p77, %p78
    %p80 = scmp.ne.s32.totalorder %s69, %s70
    %p81 = scmp.eq.s32.totalorder %s19, 0
    %p82 = por %p80, %p81
    %p83 = scmp.ne.s32.totalorder %s69, %s70
    %p84 = scmp.eq.s32.totalorder %s20, 1
    %p85 = por %p83, %p84
    %p87 = scmp.ne.s32.totalorder %s70, %s86
    %p88 = scmp.eq.s32.totalorder %s20, 0
    %p89 = por %p87, %p88
    %s90 = ssub.s32 %s21, %s33
    %s91 = ssub.s32 %s22, %s29
    %s92 = sor.u32 %s90, %s91
    %p93 = scmp.eq.s32.totalorder %s92, 0
    %s95 = sadd.s32 %s94, 1
    %s96 = scalar_select %p93, %s94, %s95
    %p99 = pneg %p93
    %p100 = scmp.eq.s32.totalorder %s14, 1
    %p101 = por %p99, %p100
    %p102 = scmp.ne.s32.totalorder %s94, %s97
    %p103 = scmp.eq.s32.totalorder %s14, 0
    %p104 = por %p102, %p103
    %p105 = scmp.ne.s32.totalorder %s94, %s97
    %p106 = scmp.eq.s32.totalorder %s19, 1
    %p107 = por %p105, %p106
    %p108 = scmp.ne.s32.totalorder %s97, %s98
    %p109 = scmp.eq.s32.totalorder %s19, 0
    %p110 = por %p108, %p109
    %p111 = scmp.ne.s32.totalorder %s97, %s98
    %p112 = scmp.eq.s32.totalorder %s20, 1
    %p113 = por %p111, %p112
    %p115 = scmp.ne.s32.totalorder %s98, %s114
    %p116 = scmp.eq.s32.totalorder %s20, 0
    %p117 = por %p115, %p116
    %s118 = ssub.s32 %s21, %s33
    %s119 = ssub.s32 %s22, %s29
    %s120 = sor.u32 %s118, %s119
    %p121 = scmp.eq.s32.totalorder %s120, 0
    %s123 = sadd.s32 %s122, 1
    %s124 = scalar_select %p121, %s122, %s123
    %p127 = pneg %p121
    %p128 = scmp.eq.s32.totalorder %s14, 1
    %p129 = por %p127, %p128
    %p130 = scmp.ne.s32.totalorder %s122, %s125
    %p131 = scmp.eq.s32.totalorder %s14, 0
    %p132 = por %p130, %p131
    %p133 = scmp.ne.s32.totalorder %s122, %s125
    %p134 = scmp.eq.s32.totalorder %s19, 1
    %p135 = por %p133, %p134
    %p136 = scmp.ne.s32.totalorder %s125, %s126
    %p137 = scmp.eq.s32.totalorder %s19, 0
    %p138 = por %p136, %p137
    %p139 = scmp.ne.s32.totalorder %s125, %s126
    %p140 = scmp.eq.s32.totalorder %s20, 1
    %p141 = por %p139, %p140
    %p143 = scmp.ne.s32.totalorder %s126, %s142
    %p144 = scmp.eq.s32.totalorder %s20, 0
    %p145 = por %p143, %p144
    %s146 = ssub.s32 %s21, %s33
    %s147 = ssub.s32 %s22, %s29
    %s148 = sor.u32 %s146, %s147
    %p149 = scmp.eq.s32.totalorder %s148, 0
    %s151 = sadd.s32 %s150, 1
    %s152 = scalar_select %p149, %s150, %s151
    %p155 = pneg %p149
    %p156 = scmp.eq.s32.totalorder %s14, 1
    %p157 = por %p155, %p156
    %p158 = scmp.ne.s32.totalorder %s150, %s153
    %p159 = scmp.eq.s32.totalorder %s14, 0
    %p160 = por %p158, %p159
    %p161 = scmp.ne.s32.totalorder %s150, %s153
    %p162 = scmp.eq.s32.totalorder %s19, 1
    %p163 = por %p161, %p162
    %p164 = scmp.ne.s32.totalorder %s153, %s154
    %p165 = scmp.eq.s32.totalorder %s19, 0
    %p166 = por %p164, %p165
    %p167 = scmp.ne.s32.totalorder %s153, %s154
    %p168 = scmp.eq.s32.totalorder %s20, 1
    %p169 = por %p167, %p168
    %p171 = scmp.ne.s32.totalorder %s154, %s170
    %p172 = scmp.eq.s32.totalorder %s20, 0
    %p173 = por %p171, %p172
    %s174 = ssub.s32 %s21, %s33
    %s175 = ssub.s32 %s22, %s29
    %s176 = sor.u32 %s174, %s175
    %p177 = scmp.eq.s32.totalorder %s176, 0
    %s179 = sadd.s32 %s178, 1
    %s180 = scalar_select %p177, %s178, %s179
    %p183 = pneg %p177
    %p184 = scmp.eq.s32.totalorder %s14, 1
    %p185 = por %p183, %p184
    %p186 = scmp.ne.s32.totalorder %s178, %s181
    %p187 = scmp.eq.s32.totalorder %s14, 0
    %p188 = por %p186, %p187
    %p189 = scmp.ne.s32.totalorder %s178, %s181
    %p190 = scmp.eq.s32.totalorder %s19, 1
    %p191 = por %p189, %p190
    %p192 = scmp.ne.s32.totalorder %s181, %s182
    %p193 = scmp.eq.s32.totalorder %s19, 0
    %p194 = por %p192, %p193
    %p195 = scmp.ne.s32.totalorder %s181, %s182
    %p196 = scmp.eq.s32.totalorder %s20, 1
    %p197 = por %p195, %p196
    %p199 = scmp.ne.s32.totalorder %s182, %s198
    %p200 = scmp.eq.s32.totalorder %s20, 0
    %p201 = por %p199, %p200
    %s202 = ssub.s32 %s21, %s33
    %s203 = ssub.s32 %s22, %s29
    %s204 = sor.u32 %s202, %s203
    %p205 = scmp.eq.s32.totalorder %s204, 0
    %s207 = sadd.s32 %s206, 1
    %s208 = scalar_select %p205, %s206, %s207
    %p211 = pneg %p205
    %p212 = scmp.eq.s32.totalorder %s14, 1
    %p213 = por %p211, %p212
    %p214 = scmp.ne.s32.totalorder %s206, %s209
    %p215 = scmp.eq.s32.totalorder %s14, 0
    %p216 = por %p214, %p215
    %p217 = scmp.ne.s32.totalorder %s206, %s209
    %p218 = scmp.eq.s32.totalorder %s19, 1
    %p219 = por %p217, %p218
    %p220 = scmp.ne.s32.totalorder %s209, %s210
    %p221 = scmp.eq.s32.totalorder %s19, 0
    %p222 = por %p220, %p221
    %p223 = scmp.ne.s32.totalorder %s209, %s210
    %p224 = scmp.eq.s32.totalorder %s20, 1
    %p225 = por %p223, %p224
    %p227 = scmp.ne.s32.totalorder %s210, %s226
    %p228 = scmp.eq.s32.totalorder %s20, 0
    %p229 = por %p227, %p228
    %s230 = ssub.s32 %s21, %s33
    %s231 = ssub.s32 %s22, %s29
    %s232 = sor.u32 %s230, %s231
    %p233 = scmp.eq.s32.totalorder %s232, 0
    %s235 = sadd.s32 %s234, 1
    %s236 = scalar_select %p233, %s234, %s235
    %p239 = pneg %p233
    %p240 = scmp.eq.s32.totalorder %s14, 1
    %p241 = por %p239, %p240
    %p242 = scmp.ne.s32.totalorder %s234, %s237
    %p243 = scmp.eq.s32.totalorder %s14, 0
    %p244 = por %p242, %p243
    %p245 = scmp.ne.s32.totalorder %s234, %s237
    %p246 = scmp.eq.s32.totalorder %s19, 1
    %p247 = por %p245, %p246
    %p248 = scmp.ne.s32.totalorder %s237, %s238
    %p249 = scmp.eq.s32.totalorder %s19, 0
    %p250 = por %p248, %p249
    %p251 = scmp.ne.s32.totalorder %s237, %s238
    %p252 = scmp.eq.s32.totalorder %s20, 1
    %p253 = por %p251, %p252
    %p255 = scmp.ne.s32.totalorder %s238, %s254
    %p256 = scmp.eq.s32.totalorder %s20, 0
    %p257 = por %p255, %p256
    %s258 = ssub.s32 %s21, %s33
    %p259 = scmp.eq.s32.totalorder %s258, 0
    %s261 = sadd.s32 %s260, 1
    %s262 = scalar_select %p259, %s260, %s261
    %p265 = pneg %p259
    %p266 = scmp.eq.s32.totalorder %s14, 1
    %p267 = por %p265, %p266
    %p268 = scmp.ne.s32.totalorder %s260, %s263
    %p269 = scmp.eq.s32.totalorder %s14, 0
    %p270 = por %p268, %p269
    %p271 = scmp.ne.s32.totalorder %s260, %s263
    %p272 = scmp.eq.s32.totalorder %s19, 1
    %p273 = por %p271, %p272
    %p274 = scmp.ne.s32.totalorder %s263, %s264
    %p275 = scmp.eq.s32.totalorder %s19, 0
    %p276 = por %p274, %p275
    %p277 = scmp.ne.s32.totalorder %s263, %s264
    %p278 = scmp.eq.s32.totalorder %s20, 1
    %p279 = por %p277, %p278
    %p281 = scmp.ne.s32.totalorder %s264, %s280
    %p282 = scmp.eq.s32.totalorder %s20, 0
    %p283 = por %p281, %p282
    %p284 = scmp.le.s32.totalorder 1, %s14
    %p285 = scmp.lt.s32.totalorder %s14, 3
    %p286 = pnand %p284, %p285
    %p287 = pneg %p286
    // Predicated region
    $region9: #{_loss_jit.1} parent=5 // pred_check
      _
    $region10: #{_loss_jit.1} parent=5 // pred_check_branch
      %289 = sbr.rel (%p286) target = $region12
    $region11: #{_loss_jit.1} parent=5 // pred_region
      %s290 = ssub.s32 %s14, 1
    $region12: #{_loss_jit.1} parent=5 // pred_fallthru
      _
    %p291 = scmp.lt.s32.totalorder %s14, 2
    // Predicated region
    $region13: #{_loss_jit.1} parent=5 // pred_check
      %p292 = pneg %p291
    $region14: #{_loss_jit.1} parent=5 // pred_check_branch
      %294 = sbr.rel (%p292) target = $region16
    $region15: #{_loss_jit.1} parent=5 // pred_region
      // Predicated region
      $region17: #{_loss_jit.1} parent=15 // pred_check
        %p295 = pneg %p48
      $region18: #{_loss_jit.1} parent=15 // pred_check_branch
        %297 = sbr.rel (%p295) target = $region20
      $region19: #{_loss_jit.1} parent=15 // pred_region
        %s298 = smul.u32 2, %s21
        %p299 = scmp.lt.s32.totalorder %s298, 3
        %s300 = scalar_select %p299, %s298, 3
        %p301 = scmp.lt.s32.totalorder %s22, 0
        %s302 = scalar_select %p301, %s22, 0
        %s303 = smul.addr %s300, 3
        %s304 = sadd.s32 %s302, %s303
        %s305 = smul.addr %s304, 2
        %s306 = scalar_lea.vmem %s0, %s305
        %s307 = smul.u32 2, %s21
      $region20: #{_loss_jit.1} parent=15 // pred_fallthru
        _
      // Predicated region
      $region21: #{_loss_jit.1} parent=15 // pred_check
        %p308 = pneg %p76
      $region22: #{_loss_jit.1} parent=15 // pred_check_branch
        %310 = sbr.rel (%p308) target = $region24
      $region23: #{_loss_jit.1} parent=15 // pred_region
        %s311 = smul.u32 2, %s21
        %p312 = scmp.lt.s32.totalorder %s311, 3
        %s313 = scalar_select %p312, %s311, 3
        %p314 = scmp.lt.s32.totalorder %s22, 0
        %s315 = scalar_select %p314, %s22, 0
        %s316 = smul.addr %s313, 3
        %s317 = sadd.s32 %s315, %s316
        %s318 = smul.addr %s317, 2
        %s319 = scalar_lea.vmem %s1, %s318
        %s320 = smul.u32 2, %s21
      $region24: #{_loss_jit.1} parent=15 // pred_fallthru
        _
      // Predicated region
      $region25: #{_loss_jit.1} parent=15 // pred_check
        %p321 = pneg %p104
      $region26: #{_loss_jit.1} parent=15 // pred_check_branch
        %323 = sbr.rel (%p321) target = $region28
      $region27: #{_loss_jit.1} parent=15 // pred_region
        %s324 = smul.u32 2, %s21
        %p325 = scmp.lt.s32.totalorder %s324, 3
        %s326 = scalar_select %p325, %s324, 3
        %p327 = scmp.lt.s32.totalorder %s22, 0
        %s328 = scalar_select %p327, %s22, 0
        %s329 = smul.addr %s326, 3
        %s330 = sadd.s32 %s328, %s329
        %s331 = smul.addr %s330, 2
        %s332 = scalar_lea.vmem %s2, %s331
        %s333 = smul.u32 2, %s21
      $region28: #{_loss_jit.1} parent=15 // pred_fallthru
        _
      // Predicated region
      $region29: #{_loss_jit.1} parent=15 // pred_check
        %p334 = pneg %p132
      $region30: #{_loss_jit.1} parent=15 // pred_check_branch
        %336 = sbr.rel (%p334) target = $region32
      $region31: #{_loss_jit.1} parent=15 // pred_region
        %s337 = smul.u32 2, %s21
        %p338 = scmp.lt.s32.totalorder %s337, 3
        %s339 = scalar_select %p338, %s337, 3
        %p340 = scmp.lt.s32.totalorder %s22, 0
        %s341 = scalar_select %p340, %s22, 0
        %s342 = smul.addr %s339, 3
        %s343 = sadd.s32 %s341, %s342
        %s344 = smul.addr %s343, 2
        %s345 = scalar_lea.vmem %s3, %s344
        %s346 = smul.u32 2, %s21
      $region32: #{_loss_jit.1} parent=15 // pred_fallthru
        _
      // Predicated region
      $region33: #{_loss_jit.1} parent=15 // pred_check
        %p347 = pneg %p160
      $region34: #{_loss_jit.1} parent=15 // pred_check_branch
        %349 = sbr.rel (%p347) target = $region36
      $region35: #{_loss_jit.1} parent=15 // pred_region
        %s350 = smul.u32 2, %s21
        %p351 = scmp.lt.s32.totalorder %s350, 3
        %s352 = scalar_select %p351, %s350, 3
        %p353 = scmp.lt.s32.totalorder %s22, 0
        %s354 = scalar_select %p353, %s22, 0
        %s355 = sadd.s32 %s354, %s352
        %s356 = smul.addr %s355, 2
        %s357 = scalar_lea.vmem %s4, %s356
        %s358 = smul.u32 2, %s21
      $region36: #{_loss_jit.1} parent=15 // pred_fallthru
        _
      // Predicated region
      $region37: #{_loss_jit.1} parent=15 // pred_check
        %p359 = pneg %p188
      $region38: #{_loss_jit.1} parent=15 // pred_check_branch
        %361 = sbr.rel (%p359) target = $region40
      $region39: #{_loss_jit.1} parent=15 // pred_region
        %s362 = smul.u32 3, %s21
        %p363 = scmp.lt.s32.totalorder %s362, 5
        %s364 = scalar_select %p363, %s362, 5
        %p365 = scmp.lt.s32.totalorder %s22, 0
        %s366 = scalar_select %p365, %s22, 0
        %s367 = sadd.s32 %s366, %s364
        %s368 = smul.addr %s367, 2
        %s369 = scalar_lea.vmem %s5, %s368
        %s370 = smul.u32 3, %s21
      $region40: #{_loss_jit.1} parent=15 // pred_fallthru
        _
      // Predicated region
      $region41: #{_loss_jit.1} parent=15 // pred_check
        %p371 = pneg %p216
      $region42: #{_loss_jit.1} parent=15 // pred_check_branch
        %373 = sbr.rel (%p371) target = $region44
      $region43: #{_loss_jit.1} parent=15 // pred_region
        %s374 = smul.u32 2, %s21
        %p375 = scmp.lt.s32.totalorder %s374, 3
        %s376 = scalar_select %p375, %s374, 3
        %p377 = scmp.lt.s32.totalorder %s22, 0
        %s378 = scalar_select %p377, %s22, 0
        %s379 = smul.addr %s376, 3
        %s380 = sadd.s32 %s378, %s379
        %s381 = smul.addr %s380, 2
        %s382 = scalar_lea.vmem %s6, %s381
        %s383 = smul.u32 2, %s21
      $region44: #{_loss_jit.1} parent=15 // pred_fallthru
        _
      // Predicated region
      $region45: #{_loss_jit.1} parent=15 // pred_check
        %p384 = pneg %p244
      $region46: #{_loss_jit.1} parent=15 // pred_check_branch
        %386 = sbr.rel (%p384) target = $region48
      $region47: #{_loss_jit.1} parent=15 // pred_region
        %p387 = scmp.lt.s32.totalorder %s21, 1
        %s388 = scalar_select %p387, %s21, 1
        %p389 = scmp.lt.s32.totalorder %s22, 0
        %s390 = scalar_select %p389, %s22, 0
        %s391 = sadd.s32 %s390, %s388
        %s392 = smul.addr %s391, 2
        %s393 = scalar_lea.vmem %s7, %s392
      $region48: #{_loss_jit.1} parent=15 // pred_fallthru
        _
    $region16: #{_loss_jit.1} parent=5 // pred_fallthru
      _
    %p394 = scmp.le.s32.totalorder 1, %s14
    %p395 = scmp.lt.s32.totalorder %s14, 3
    %p396 = pnand %p394, %p395
    %p397 = pneg %p396
    // Predicated region
    $region49: #{_loss_jit.1} parent=5 // pred_check
      _
    $region50: #{_loss_jit.1} parent=5 // pred_check_branch
      %399 = sbr.rel (%p396) target = $region52
    $region51: #{_loss_jit.1} parent=5 // pred_region
      %s400 = ssub.s32 %s14, 1
      %s401 = smul.u32 2, %s23
      %p402 = scmp.lt.s32.totalorder %s401, 3
      %s403 = scalar_select %p402, %s401, 3
      %p404 = scmp.lt.s32.totalorder %s24, 0
      %s405 = scalar_select %p404, %s24, 0
      %s406 = smul.addr %s403, 3
      %s407 = sadd.s32 %s405, %s406
      %s408 = smul.addr %s407, 2
      %s409 = scalar_lea.vmem %s0, %s408
      %p410 = pneg %p54
      %p411 = pneg %p51
      %s412 = smul.u32 2, %s23
      %p413 = scmp.lt.s32.totalorder %s412, 3
      %s414 = scalar_select %p413, %s412, 3
      %p415 = scmp.lt.s32.totalorder %s24, 0
      %s416 = scalar_select %p415, %s24, 0
      %s417 = smul.addr %s414, 3
      %s418 = sadd.s32 %s416, %s417
      %s419 = smul.addr %s418, 2
      %s420 = scalar_lea.vmem %s1, %s419
      %p421 = pneg %p82
      %p422 = pneg %p79
      %s423 = smul.u32 2, %s23
      %p424 = scmp.lt.s32.totalorder %s423, 3
      %s425 = scalar_select %p424, %s423, 3
      %p426 = scmp.lt.s32.totalorder %s24, 0
      %s427 = scalar_select %p426, %s24, 0
      %s428 = smul.addr %s425, 3
      %s429 = sadd.s32 %s427, %s428
      %s430 = smul.addr %s429, 2
      %s431 = scalar_lea.vmem %s2, %s430
      %p432 = pneg %p110
      %p433 = pneg %p107
      %s434 = smul.u32 2, %s23
      %p435 = scmp.lt.s32.totalorder %s434, 3
      %s436 = scalar_select %p435, %s434, 3
      %p437 = scmp.lt.s32.totalorder %s24, 0
      %s438 = scalar_select %p437, %s24, 0
      %s439 = smul.addr %s436, 3
      %s440 = sadd.s32 %s438, %s439
      %s441 = smul.addr %s440, 2
      %s442 = scalar_lea.vmem %s3, %s441
      %p443 = pneg %p138
      %p444 = pneg %p135
      %s445 = smul.u32 2, %s23
      %p446 = scmp.lt.s32.totalorder %s445, 3
      %s447 = scalar_select %p446, %s445, 3
      %p448 = scmp.lt.s32.totalorder %s24, 0
      %s449 = scalar_select %p448, %s24, 0
      %s450 = sadd.s32 %s449, %s447
      %s451 = smul.addr %s450, 2
      %s452 = scalar_lea.vmem %s4, %s451
      %p453 = pneg %p166
      %p454 = pneg %p163
      %s455 = smul.u32 3, %s23
      %p456 = scmp.lt.s32.totalorder %s455, 5
      %s457 = scalar_select %p456, %s455, 5
      %p458 = scmp.lt.s32.totalorder %s24, 0
      %s459 = scalar_select %p458, %s24, 0
      %s460 = sadd.s32 %s459, %s457
      %s461 = smul.addr %s460, 2
      %s462 = scalar_lea.vmem %s5, %s461
      %p463 = pneg %p194
      %p464 = pneg %p191
      %s465 = smul.u32 2, %s23
      %p466 = scmp.lt.s32.totalorder %s465, 3
      %s467 = scalar_select %p466, %s465, 3
      %p468 = scmp.lt.s32.totalorder %s24, 0
      %s469 = scalar_select %p468, %s24, 0
      %s470 = smul.addr %s467, 3
      %s471 = sadd.s32 %s469, %s470
      %s472 = smul.addr %s471, 2
      %s473 = scalar_lea.vmem %s6, %s472
      %p474 = pneg %p222
      %p475 = pneg %p219
      %p476 = scmp.lt.s32.totalorder %s23, 1
      %s477 = scalar_select %p476, %s23, 1
      %p478 = scmp.lt.s32.totalorder %s24, 0
      %s479 = scalar_select %p478, %s24, 0
      %s480 = sadd.s32 %s479, %s477
      %s481 = smul.addr %s480, 2
      %s482 = scalar_lea.vmem %s7, %s481
      %p483 = pneg %p250
      %p484 = pneg %p247
      %p485 = pneg %p276
      %p486 = pneg %p273
      %p487 = scmp.lt.s32.totalorder %s23, 1
      %s488 = scalar_select %p487, %s23, 1
      %s489 = scalar_lea.vmem %s8, %s488
      %s490 = smul.u32 2, %s23
      %p491 = scmp.lt.s32.totalorder %s490, 3
      %s492 = scalar_select %p491, %s490, 3
      %p493 = scmp.lt.s32.totalorder %s24, 0
      %s494 = scalar_select %p493, %s24, 0
      %s495 = smul.addr %s492, 3
      %s496 = sadd.s32 %s494, %s495
      %s497 = smul.addr %s496, 2
      %s498 = scalar_lea.vmem %s0, %s497
      %s499 = smul.u32 2, %s23
      %s500 = smul.u32 2, %s23
      %p501 = scmp.lt.s32.totalorder %s500, 3
      %s502 = scalar_select %p501, %s500, 3
      %p503 = scmp.lt.s32.totalorder %s24, 0
      %s504 = scalar_select %p503, %s24, 0
      %s505 = smul.addr %s502, 3
      %s506 = sadd.s32 %s504, %s505
      %s507 = smul.addr %s506, 2
      %s508 = scalar_lea.vmem %s1, %s507
      %s509 = smul.u32 2, %s23
      %s510 = smul.u32 2, %s23
      %p511 = scmp.lt.s32.totalorder %s510, 3
      %s512 = scalar_select %p511, %s510, 3
      %p513 = scmp.lt.s32.totalorder %s24, 0
      %s514 = scalar_select %p513, %s24, 0
      %s515 = smul.addr %s512, 3
      %s516 = sadd.s32 %s514, %s515
      %s517 = smul.addr %s516, 2
      %s518 = scalar_lea.vmem %s2, %s517
      %s519 = smul.u32 2, %s23
      %s520 = smul.u32 2, %s23
      %p521 = scmp.lt.s32.totalorder %s520, 3
      %s522 = scalar_select %p521, %s520, 3
      %p523 = scmp.lt.s32.totalorder %s24, 0
      %s524 = scalar_select %p523, %s24, 0
      %s525 = smul.addr %s522, 3
      %s526 = sadd.s32 %s524, %s525
      %s527 = smul.addr %s526, 2
      %s528 = scalar_lea.vmem %s3, %s527
      %s529 = smul.u32 2, %s23
      %s530 = smul.u32 2, %s23
      %p531 = scmp.lt.s32.totalorder %s530, 3
      %s532 = scalar_select %p531, %s530, 3
      %p533 = scmp.lt.s32.totalorder %s24, 0
      %s534 = scalar_select %p533, %s24, 0
      %s535 = sadd.s32 %s534, %s532
      %s536 = smul.addr %s535, 2
      %s537 = scalar_lea.vmem %s4, %s536
      %s538 = smul.u32 2, %s23
      %s539 = smul.u32 3, %s23
      %p540 = scmp.lt.s32.totalorder %s539, 5
      %s541 = scalar_select %p540, %s539, 5
      %p542 = scmp.lt.s32.totalorder %s24, 0
      %s543 = scalar_select %p542, %s24, 0
      %s544 = sadd.s32 %s543, %s541
      %s545 = smul.addr %s544, 2
      %s546 = scalar_lea.vmem %s5, %s545
      %s547 = smul.u32 3, %s23
      %s548 = smul.u32 2, %s23
      %p549 = scmp.lt.s32.totalorder %s548, 3
      %s550 = scalar_select %p549, %s548, 3
      %p551 = scmp.lt.s32.totalorder %s24, 0
      %s552 = scalar_select %p551, %s24, 0
      %s553 = smul.addr %s550, 3
      %s554 = sadd.s32 %s552, %s553
      %s555 = smul.addr %s554, 2
      %s556 = scalar_lea.vmem %s6, %s555
      %s557 = smul.u32 2, %s23
      %p558 = scmp.lt.s32.totalorder %s23, 1
      %s559 = scalar_select %p558, %s23, 1
      %p560 = scmp.lt.s32.totalorder %s24, 0
      %s561 = scalar_select %p560, %s24, 0
      %s562 = sadd.s32 %s561, %s559
      %s563 = smul.addr %s562, 2
      %s564 = scalar_lea.vmem %s7, %s563
      %p565 = scmp.lt.s32.totalorder %s23, 1
      %s566 = scalar_select %p565, %s23, 1
      %s567 = scalar_lea.vmem %s8, %s566
      %p568 = scmp.eq.s32.totalorder %s24, 0
      // Predicated region
      $region53: #{_loss_jit.1} parent=51 // pred_check
        %p569 = pneg %p568
      $region54: #{_loss_jit.1} parent=51 // pred_check_branch
        %571 = sbr.rel (%p569) target = $region56
      $region55: #{_loss_jit.1} parent=51 // pred_region
        %572 = vst [vmem:[#allocation2] sm:$0x1] 0.0
      $region56: #{_loss_jit.1} parent=51 // pred_fallthru
        _
      %v573 = vld [vmem:[%s537] sm:$0x3]
      %v574 = vld [vmem:[%s537 + $0x2] sm:$0x3]
      %v575 = vld [vmem:[%s498] sm:$0x3]
      %v576 = vld [vmem:[%s498 + $0x2] sm:$0x3]
      %v577 = vld [vmem:[%s498 + $0x4] sm:$0x3]
      %v578 = vld [vmem:[%s498 + $0x6] sm:$0x3]
      %v579 = vld [vmem:[%s498 + $0x8] sm:$0x3]
      %v580 = vld [vmem:[%s498 + $0xa] sm:$0x3]
      %v581 = vld [vmem:[%s508] sm:$0x3]
      %v582 = vld [vmem:[%s508 + $0x2] sm:$0x3]
      %v583 = vld [vmem:[%s508 + $0x4] sm:$0x3]
      %v584 = vld [vmem:[%s508 + $0x6] sm:$0x3]
      %v585 = vld [vmem:[%s508 + $0x8] sm:$0x3]
      %v586 = vld [vmem:[%s508 + $0xa] sm:$0x3]
      %v587 = vld [vmem:[%s518] sm:$0x3]
      %v588 = vld [vmem:[%s518 + $0x2] sm:$0x3]
      %v589 = vld [vmem:[%s518 + $0x4] sm:$0x3]
      %v590 = vld [vmem:[%s518 + $0x6] sm:$0x3]
      %v591 = vld [vmem:[%s518 + $0x8] sm:$0x3]
      %v592 = vld [vmem:[%s518 + $0xa] sm:$0x3]
      %v593 = vld [vmem:[%s528] sm:$0x3]
      %v594 = vld [vmem:[%s528 + $0x2] sm:$0x3]
      %v595 = vld [vmem:[%s528 + $0x4] sm:$0x3]
      %v596 = vld [vmem:[%s528 + $0x6] sm:$0x3]
      %v597 = vld [vmem:[%s528 + $0x8] sm:$0x3]
      %v598 = vld [vmem:[%s528 + $0xa] sm:$0x3]
      %v599 = vmul.f32 %v573, 0.5
      %v600 = vmul.f32 %v574, 0.5
      %v601 = vsub.f32 %v587, %v575
      %v602 = vsub.f32 %v588, %v576
      %v603 = vsub.f32 %v589, %v577
      %v604 = vsub.f32 %v590, %v578
      %v605 = vsub.f32 %v591, %v579
      %v606 = vsub.f32 %v592, %v580
      %v607 = vmul.f32 %v575, 2.0
      %v608 = vmul.f32 %v576, 2.0
      %v609 = vmul.f32 %v577, 2.0
      %v610 = vmul.f32 %v578, 2.0
      %v611 = vmul.f32 %v579, 2.0
      %v612 = vmul.f32 %v580, 2.0
      %v613 = vmul.f32 %v581, 5.0
      %v614 = vmul.f32 %v582, 5.0
      %v615 = vmul.f32 %v583, 5.0
      %v616 = vmul.f32 %v584, 5.0
      %v617 = vmul.f32 %v585, 5.0
      %v618 = vmul.f32 %v586, 5.0
      %v619 = vsub.f32 %v607, %v613
      %v620 = vsub.f32 %v608, %v614
      %v621 = vsub.f32 %v609, %v615
      %v622 = vsub.f32 %v610, %v616
      %v623 = vsub.f32 %v611, %v617
      %v624 = vsub.f32 %v612, %v618
      %v625 = vmul.f32 %v587, 4.0
      %v626 = vmul.f32 %v588, 4.0
      %v627 = vmul.f32 %v589, 4.0
      %v628 = vmul.f32 %v590, 4.0
      %v629 = vmul.f32 %v591, 4.0
      %v630 = vmul.f32 %v592, 4.0
      %v631 = vadd.f32 %v619, %v625
      %v632 = vadd.f32 %v620, %v626
      %v633 = vadd.f32 %v621, %v627
      %v634 = vadd.f32 %v622, %v628
      %v635 = vadd.f32 %v623, %v629
      %v636 = vadd.f32 %v624, %v630
      %v637 = vsub.f32 %v631, %v593
      %v638 = vsub.f32 %v632, %v594
      %v639 = vsub.f32 %v633, %v595
      %v640 = vsub.f32 %v634, %v596
      %v641 = vsub.f32 %v635, %v597
      %v642 = vsub.f32 %v636, %v598
      %v643 = vsub.f32 %v581, %v587
      %v644 = vsub.f32 %v582, %v588
      %v645 = vsub.f32 %v583, %v589
      %v646 = vsub.f32 %v584, %v590
      %v647 = vsub.f32 %v585, %v591
      %v648 = vsub.f32 %v586, %v592
      %v649 = vmul.f32 %v643, 3.0
      %v650 = vmul.f32 %v644, 3.0
      %v651 = vmul.f32 %v645, 3.0
      %v652 = vmul.f32 %v646, 3.0
      %v653 = vmul.f32 %v647, 3.0
      %v654 = vmul.f32 %v648, 3.0
      %v655 = vadd.f32 %v649, %v593
      %v656 = vadd.f32 %v650, %v594
      %v657 = vadd.f32 %v651, %v595
      %v658 = vadd.f32 %v652, %v596
      %v659 = vadd.f32 %v653, %v597
      %v660 = vadd.f32 %v654, %v598
      %v661 = vsub.f32 %v655, %v575
      %v662 = vsub.f32 %v656, %v576
      %v663 = vsub.f32 %v657, %v577
      %v664 = vsub.f32 %v658, %v578
      %v665 = vsub.f32 %v659, %v579
      %v666 = vsub.f32 %v660, %v580
      %v667 = vmul.f32 %v573, %v661
      %v668 = vmul.f32 %v573, %v662
      %v669 = vmul.f32 %v573, %v663
      %v670 = vmul.f32 %v574, %v664
      %v671 = vmul.f32 %v574, %v665
      %v672 = vmul.f32 %v574, %v666
      %v673 = vadd.f32 %v637, %v667
      %v674 = vadd.f32 %v638, %v668
      %v675 = vadd.f32 %v639, %v669
      %v676 = vadd.f32 %v640, %v670
      %v677 = vadd.f32 %v641, %v671
      %v678 = vadd.f32 %v642, %v672
      %v679 = vmul.f32 %v573, %v673
      %v680 = vmul.f32 %v573, %v674
      %v681 = vmul.f32 %v573, %v675
      %v682 = vmul.f32 %v574, %v676
      %v683 = vmul.f32 %v574, %v677
      %v684 = vmul.f32 %v574, %v678
      %v685 = vadd.f32 %v601, %v679
      %v686 = vadd.f32 %v602, %v680
      %v687 = vadd.f32 %v603, %v681
      %v688 = vadd.f32 %v604, %v682
      %v689 = vadd.f32 %v605, %v683
      %v690 = vadd.f32 %v606, %v684
      %v691 = vmul.f32 %v599, %v685
      %v692 = vmul.f32 %v599, %v686
      %v693 = vmul.f32 %v599, %v687
      %v694 = vmul.f32 %v600, %v688
      %v695 = vmul.f32 %v600, %v689
      %v696 = vmul.f32 %v600, %v690
      %v697 = vadd.f32 %v581, %v691
      %v698 = vadd.f32 %v582, %v692
      %v699 = vadd.f32 %v583, %v693
      %v700 = vadd.f32 %v584, %v694
      %v701 = vadd.f32 %v585, %v695
      %v702 = vadd.f32 %v586, %v696
      %v703 = vld [vmem:[%s556] sm:$0x3]
      %v704 = vld [vmem:[%s556 + $0x2] sm:$0x3]
      %v705 = vld [vmem:[%s556 + $0x4] sm:$0x3]
      %v706 = vld [vmem:[%s556 + $0x6] sm:$0x3]
      %v707 = vld [vmem:[%s556 + $0x8] sm:$0x3]
      %v708 = vld [vmem:[%s556 + $0xa] sm:$0x3]
      %v709 = vld [vmem:[%s564] sm:$0x3]
      %v710 = vmul.f32 %v703, %v709
      %v711 = vmul.f32 %v704, %v709
      %v712 = vmul.f32 %v705, %v709
      %v713 = vmul.f32 %v706, %v709
      %v714 = vmul.f32 %v707, %v709
      %v715 = vmul.f32 %v708, %v709
      %v716 = vld [vmem:[%s546] sm:$0x3]
      %v717 = vld [vmem:[%s546 + $0x2] sm:$0x3]
      %v718 = vld [vmem:[%s546 + $0x4] sm:$0x3]
      %v719 = vsub.f32 %v697, %v716
      %v720 = vsub.f32 %v698, %v717
      %v721 = vsub.f32 %v699, %v718
      %v722 = vsub.f32 %v700, %v716
      %v723 = vsub.f32 %v701, %v717
      %v724 = vsub.f32 %v702, %v718
      %v725 = vmul.f32 %v710, %v719
      %v726 = vmul.f32 %v711, %v720
      %v727 = vmul.f32 %v712, %v721
      %v728 = vmul.f32 %v713, %v722
      %v729 = vmul.f32 %v714, %v723
      %v730 = vmul.f32 %v715, %v724
      %v731 = vand.u32 2147483647, %v725
      %v732 = vand.u32 2147483647, %v726
      %v733 = vand.u32 2147483647, %v727
      %v734 = vand.u32 2147483647, %v728
      %v735 = vand.u32 2147483647, %v729
      %v736 = vand.u32 2147483647, %v730
      %v737 = vld [vmem:[#allocation2] sm:$0x1]
      %vm738 = vcmask 1041408
      %v739 = vsel %vm738, %v731, 0.0
      %v740 = vsel %vm738, %v732, 0.0
      %v741 = vadd.f32 %v739, %v740
      %v742 = vsel %vm738, %v733, 0.0
      %v743 = vadd.f32 %v741, %v742
      %v744 = vsel %vm738, %v734, 0.0
      %v745 = vadd.f32 %v743, %v744
      %v746 = vsel %vm738, %v735, 0.0
      %v747 = vadd.f32 %v745, %v746
      %v748 = vsel %vm738, %v736, 0.0
      %v749 = vadd.f32 %v747, %v748
      %750 = vadd.xlane.f32.xlu0 %v749
      %v751 = vpop.xlane.xlu0 %750
      %v752 = vrot.slane %v751, 4
      %v753 = vadd.f32 %v751, %v752
      %v754 = vrot.slane %v753, 2
      %v755 = vadd.f32 %v753, %v754
      %v756 = vrot.slane %v755, 1
      %v757 = vadd.f32 %v755, %v756
      %s758 = vtos %v757
      %v759 = vstv %s758
      %v760 = vadd.f32 %v737, %v759
      %761 = vst [vmem:[#allocation2] sm:$0x1] %v760
      // Predicated region
      $region57: #{_loss_jit.1} parent=51 // pred_check
        %p762 = pneg %p568
      $region58: #{_loss_jit.1} parent=51 // pred_check_branch
        %764 = sbr.rel (%p762) target = $region60
      $region59: #{_loss_jit.1} parent=51 // pred_region
        %v765 = vld [vmem:[#allocation2] sm:$0x1]
        %766 = vst [vmem:[%s567] sm:$0x1] %v765
      $region60: #{_loss_jit.1} parent=51 // pred_fallthru
        _
      %p767 = scmp.lt.s32.totalorder %s23, 1
      %s768 = scalar_select %p767, %s23, 1
      %s769 = scalar_lea.vmem %s8, %s768
      // Predicated region
      $region61: #{_loss_jit.1} parent=51 // pred_check
        %p770 = pneg %p273
      $region62: #{_loss_jit.1} parent=51 // pred_check_branch
        %772 = sbr.rel (%p770) target = $region64
      $region63: #{_loss_jit.1} parent=51 // pred_region
        _
      $region64: #{_loss_jit.1} parent=51 // pred_fallthru
        _
    $region52: #{_loss_jit.1} parent=5 // pred_fallthru
      _
    %p773 = scmp.le.s32.totalorder 2, %s14
    // Predicated region
    $region65: #{_loss_jit.1} parent=5 // pred_check
      %p774 = pneg %p773
    $region66: #{_loss_jit.1} parent=5 // pred_check_branch
      %776 = sbr.rel (%p774) target = $region68
    $region67: #{_loss_jit.1} parent=5 // pred_region
      %s777 = ssub.s32 %s14, 2
      // Predicated region
      $region69: #{_loss_jit.1} parent=67 // pred_check
        %p778 = pneg %p279
      $region70: #{_loss_jit.1} parent=67 // pred_check_branch
        %780 = sbr.rel (%p778) target = $region72
      $region71: #{_loss_jit.1} parent=67 // pred_region
        %p781 = scmp.lt.s32.totalorder %s25, 1
        %s782 = scalar_select %p781, %s25, 1
        %s783 = scalar_lea.vmem %s8, %s782
      $region72: #{_loss_jit.1} parent=67 // pred_fallthru
        _
    $region68: #{_loss_jit.1} parent=5 // pred_fallthru
      _
  $region6: #{_loss_jit.1} parent=0 // loop_footer
    %s18 = sadd.s32 1, %s14
  $region7: #{_loss_jit.1} parent=0 // loop_footer_branch
    %13 = sbr.rel target = $region3
  $region8: #{_loss_jit.1} parent=0 // loop_exit
    _

</llo_original>
